<compile_context>
chip_gen: v7x
topology: tpu7x:2x2x1
jax: 0.10.0
libtpu: 0.0.40
codegen_flags: <defaults>
</compile_context>

<pallas_src>
import functools

import jax
import jax.numpy as jnp
from jax.experimental import pallas as pl
from jax.experimental.pallas import tpu as pltpu

_LANE = 128


def _round_up(a, b):
    return (a + b - 1) // b * b


def gin_kernel(adj_ref, x_ref, w1_ref, b1_ref, w2_ref, b2_ref, out_ref, acc_ref):
    k = pl.program_id(1)

    @pl.when(k == 0)
    def _init():
        acc_ref[...] = jnp.zeros_like(acc_ref)

    # Neighbor aggregation + eps residual in one MXU matmul:
    #   acc += (A + (1+eps) I)[tile_i, tile_k] @ x[tile_k, :]
    # Adjacency is stored bf16 (exact small integers / 1+eps); cast keeps accum exact.
    acc_ref[...] += jnp.dot(
        adj_ref[...].astype(jnp.float32),
        x_ref[...],
        preferred_element_type=jnp.float32,
    )

    @pl.when(k == pl.num_programs(1) - 1)
    def _finalize():
        h = acc_ref[...]                                                  # [TM, F_pad]
        h1 = jnp.dot(h, w1_ref[...], preferred_element_type=jnp.float32) + b1_ref[...]
        h1 = jnp.maximum(h1, 0.0)                                         # [TM, H_pad]
        y = jnp.dot(h1, w2_ref[...], preferred_element_type=jnp.float32) + b2_ref[...]
        out_ref[...] = y.astype(out_ref.dtype)                            # [TM, O_pad]


def build_gin_adjacency(edge_index, num_nodes, eps=0.0, *, n_pad=None):
    """Dense (A + (1+eps) I) with self-loops removed, zero-padded to n_pad, bf16.

    bf16 is exact for per-pair edge multiplicities < 256 and for eps == 0; for a
    nonzero trained eps that needs full precision, build this array in float32.
    Build once per graph and reuse across GINConv calls.
    """
    if n_pad is None:
        n_pad = num_nodes
    row, col = edge_index[0], edge_index[1]
    keep = (row != col).astype(jnp.float32)                  # remove_self_loops
    adj = jnp.zeros((n_pad, n_pad), jnp.float32).at[row, col].add(keep)
    diag = jnp.arange(num_nodes)
    adj = adj.at[diag, diag].set(1.0 + eps)                  # fold (1+eps)*x into A@x
    return adj.astype(jnp.bfloat16)


@functools.partial(jax.jit, static_argnames=())
def _identity(x):  # tiny helper so the wrapper stays jittable end-to-end if desired
    return x


def gin_conv(x, edge_index, eps, w1, b1, w2, b2, *, adj=None):
    """GINConv forward.  x: [N, F] float32, edge_index: [2, E] int32.

    If `adj` (from build_gin_adjacency, padded to the internal N_pad) is supplied,
    edge_index/eps are ignored for the aggregation and the O(N^2) build is skipped.
    """
    N, F_in = x.shape
    H = w1.shape[1]
    OUT = w2.shape[1]

    # Tile / padding choices: lane-aligned (multiples of 128); TM=TK capped at 512
    # so double-buffered f32/bf16 tiles stay within a few MiB of VMEM on every gen
    # (v5e/v6e 128 MiB, v7x 64 MiB physical).
    tile = min(512, _round_up(N, _LANE))
    n_pad = _round_up(N, tile)
    f_pad = _round_up(F_in, _LANE)
    h_pad = _round_up(H, _LANE)
    o_pad = _round_up(OUT, _LANE)

    if adj is None:
        adj = build_gin_adjacency(edge_index, N, eps, n_pad=n_pad)

    x_p = jnp.pad(x.astype(jnp.float32), ((0, n_pad - N), (0, f_pad - F_in)))
    w1_p = jnp.pad(w1.astype(jnp.float32), ((0, f_pad - F_in), (0, h_pad - H)))
    b1_p = jnp.pad(b1.astype(jnp.float32).reshape(1, -1), ((0, 0), (0, h_pad - H)))
    w2_p = jnp.pad(w2.astype(jnp.float32), ((0, h_pad - H), (0, o_pad - OUT)))
    b2_p = jnp.pad(b2.astype(jnp.float32).reshape(1, -1), ((0, 0), (0, o_pad - OUT)))

    grid = (n_pad // tile, n_pad // tile)  # (row tiles: parallel, neighbor tiles: reduce)

    out_p = pl.pallas_call(
        gin_kernel,
        out_shape=jax.ShapeDtypeStruct((n_pad, o_pad), x.dtype),
        grid_spec=pltpu.PrefetchScalarGridSpec(
            num_scalar_prefetch=0,
            grid=grid,
            in_specs=[
                pl.BlockSpec((tile, tile), lambda i, k: (i, k)),    # adjacency tile
                pl.BlockSpec((tile, f_pad), lambda i, k: (k, 0)),   # x neighbor tile
                pl.BlockSpec((f_pad, h_pad), lambda i, k: (0, 0)),  # w1 (resident)
                pl.BlockSpec((1, h_pad), lambda i, k: (0, 0)),      # b1 (resident)
                pl.BlockSpec((h_pad, o_pad), lambda i, k: (0, 0)),  # w2 (resident)
                pl.BlockSpec((1, o_pad), lambda i, k: (0, 0)),      # b2 (resident)
            ],
            out_specs=pl.BlockSpec((tile, o_pad), lambda i, k: (i, 0)),
            scratch_shapes=[pltpu.VMEM((tile, f_pad), jnp.float32)],  # f32 accumulator
        ),
        compiler_params=pltpu.CompilerParams(
            dimension_semantics=("parallel", "arbitrary"),
            vmem_limit_bytes=32 * 1024 * 1024,
        ),
    )(adj, x_p, w1_p, b1_p, w2_p, b2_p)

    return out_p[:N, :OUT]


def gin_conv_ref(x, edge_index, eps, w1, b1, w2, b2):
    """Pure-JAX reference matching the PyTorch forward."""
    row, col = edge_index[0], edge_index[1]
    keep = row != col
    msgs = jnp.where(keep[:, None], x[col], 0.0)
    agg = jnp.zeros_like(x).at[row].add(msgs)          # scatter_add
    h = (1.0 + eps) * x + agg
    h1 = jnp.maximum(h @ w1 + b1, 0.0)
    return h1 @ w2 + b2


if __name__ == "__main__":
    N, F_IN, H, OUT = 16, 32, 64, 32
    E = 48
    key = jax.random.PRNGKey(0)
    kx, ke, k1, k2, k3, k4 = jax.random.split(key, 6)

    x = jax.random.normal(kx, (N, F_IN), jnp.float32)
    edge_index = jax.random.randint(ke, (2, E), 0, N, jnp.int32)

    # deterministic parameter init for self.nn = Linear(F,H) -> ReLU -> Linear(H,OUT)
    w1 = jax.random.normal(k1, (F_IN, H), jnp.float32) * (1.0 / jnp.sqrt(F_IN))
    b1 = jax.random.normal(k2, (H,), jnp.float32) * 0.01
    w2 = jax.random.normal(k3, (H, OUT), jnp.float32) * (1.0 / jnp.sqrt(H))
    b2 = jax.random.normal(k4, (OUT,), jnp.float32) * 0.01
    eps = 0.0  # GINConv default (train_eps=False)

    out = gin_conv(x, edge_index, eps, w1, b1, w2, b2)
    out = jax.block_until_ready(out)

    ref = gin_conv_ref(x, edge_index, eps, w1, b1, w2, b2)
    assert out.shape == (N, OUT)
    assert jnp.allclose(out, ref, atol=1e-4, rtol=1e-4), "mismatch vs reference"
    print("KERNEL_OK")
</pallas_src>

<mosaic_0001>
module attributes {stable_mosaic.version = 11 : i64} {
  func.func @gin_kernel(%arg0: i32, %arg1: i32, %arg2: memref<128x128xbf16, #tpu.memory_space<vmem>>, %arg3: memref<128x128xf32, #tpu.memory_space<vmem>>, %arg4: memref<128x128xf32, #tpu.memory_space<vmem>>, %arg5: memref<1x128xf32, #tpu.memory_space<vmem>>, %arg6: memref<128x128xf32, #tpu.memory_space<vmem>>, %arg7: memref<1x128xf32, #tpu.memory_space<vmem>>, %arg8: memref<128x128xf32, #tpu.memory_space<vmem>>, %arg9: memref<128x128xf32, #tpu.memory_space<vmem>>) attributes {dimension_semantics = [#tpu.dimension_semantics<parallel>, #tpu.dimension_semantics<arbitrary>], iteration_bounds = array<i64: 1, 1>, scalar_prefetch = 0 : i64, scratch_operands = 1 : i64, tpu.core_type = #tpu.core_type<tc>, window_params = [{transform_indices = @transform_0, window_bounds = array<i64: 128, 128>}, {transform_indices = @transform_1, window_bounds = array<i64: 128, 128>}, {pipeline_mode = #tpu.pipeline_mode<synchronous>, transform_indices = @transform_2, window_bounds = array<i64: 128, 128>}, {pipeline_mode = #tpu.pipeline_mode<synchronous>, transform_indices = @transform_3, window_bounds = array<i64: 1, 128>}, {pipeline_mode = #tpu.pipeline_mode<synchronous>, transform_indices = @transform_4, window_bounds = array<i64: 128, 128>}, {pipeline_mode = #tpu.pipeline_mode<synchronous>, transform_indices = @transform_5, window_bounds = array<i64: 1, 128>}, {transform_indices = @transform_6, window_bounds = array<i64: 128, 128>}]} {
    %c0_i32 = arith.constant 0 : i32
    %0 = arith.cmpi eq, %arg1, %c0_i32 : i32
    %1 = arith.extui %0 : i1 to i32
    %c0_i32_0 = arith.constant 0 : i32
    %2 = arith.cmpi ne, %1, %c0_i32_0 : i32
    scf.if %2 {
      %cst_10 = arith.constant 0.000000e+00 : f32
      %13 = vector.broadcast %cst_10 : f32 to vector<128x128xf32>
      %c0_11 = arith.constant 0 : index
      %c0_12 = arith.constant 0 : index
      %14 = vector.load %arg9[%c0_11, %c0_12] : memref<128x128xf32, #tpu.memory_space<vmem>>, vector<128x128xf32>
      tpu.vector_store %arg9[%c0_11, %c0_12], %13 {strides = array<i32>} : memref<128x128xf32, #tpu.memory_space<vmem>>, vector<128x128xf32>,
    } else {
    }
    %c0 = arith.constant 0 : index
    %c0_1 = arith.constant 0 : index
    %3 = vector.load %arg9[%c0, %c0_1] : memref<128x128xf32, #tpu.memory_space<vmem>>, vector<128x128xf32>
    %c0_2 = arith.constant 0 : index
    %c0_3 = arith.constant 0 : index
    %4 = vector.load %arg2[%c0_2, %c0_3] : memref<128x128xbf16, #tpu.memory_space<vmem>>, vector<128x128xbf16>
    %5 = arith.extf %4 : vector<128x128xbf16> to vector<128x128xf32>
    %c0_4 = arith.constant 0 : index
    %c0_5 = arith.constant 0 : index
    %6 = vector.load %arg3[%c0_4, %c0_5] : memref<128x128xf32, #tpu.memory_space<vmem>>, vector<128x128xf32>
    %cst = arith.constant dense<0.000000e+00> : vector<128x128xf32>
    %7 = tpu.matmul %5, %6, %cst {dimension_numbers = #tpu.dot_dimension_numbers<[1], [0], [0], [1], [0, 0, 1, 1], [], []>} : vector<128x128xf32>, vector<128x128xf32>, vector<128x128xf32> -> vector<128x128xf32>
    %8 = arith.addf %3, %7 : vector<128x128xf32>
    %c0_6 = arith.constant 0 : index
    %c0_7 = arith.constant 0 : index
    %9 = vector.load %arg9[%c0_6, %c0_7] : memref<128x128xf32, #tpu.memory_space<vmem>>, vector<128x128xf32>
    tpu.vector_store %arg9[%c0_6, %c0_7], %8 {strides = array<i32>} : memref<128x128xf32, #tpu.memory_space<vmem>>, vector<128x128xf32>,
    %c0_i32_8 = arith.constant 0 : i32
    %10 = arith.cmpi eq, %arg1, %c0_i32_8 : i32
    %11 = arith.extui %10 : i1 to i32
    %c0_i32_9 = arith.constant 0 : i32
    %12 = arith.cmpi ne, %11, %c0_i32_9 : i32
    scf.if %12 {
      %c0_10 = arith.constant 0 : index
      %c0_11 = arith.constant 0 : index
      %13 = vector.load %arg9[%c0_10, %c0_11] : memref<128x128xf32, #tpu.memory_space<vmem>>, vector<128x128xf32>
      %c0_12 = arith.constant 0 : index
      %c0_13 = arith.constant 0 : index
      %14 = vector.load %arg4[%c0_12, %c0_13] : memref<128x128xf32, #tpu.memory_space<vmem>>, vector<128x128xf32>
      %cst_14 = arith.constant dense<0.000000e+00> : vector<128x128xf32>
      %15 = tpu.matmul %13, %14, %cst_14 {dimension_numbers = #tpu.dot_dimension_numbers<[1], [0], [0], [1], [0, 0, 1, 1], [], []>} : vector<128x128xf32>, vector<128x128xf32>, vector<128x128xf32> -> vector<128x128xf32>
      %c0_15 = arith.constant 0 : index
      %c0_16 = arith.constant 0 : index
      %16 = vector.load %arg5[%c0_15, %c0_16] : memref<1x128xf32, #tpu.memory_space<vmem>>, vector<1x128xf32>
      %17 = vector.broadcast %16 : vector<1x128xf32> to vector<128x128xf32>
      %18 = arith.addf %15, %17 : vector<128x128xf32>
      %cst_17 = arith.constant 0.000000e+00 : f32
      %19 = vector.broadcast %cst_17 : f32 to vector<128x128xf32>
      %20 = arith.maximumf %18, %19 : vector<128x128xf32>
      %c0_18 = arith.constant 0 : index
      %c0_19 = arith.constant 0 : index
      %21 = vector.load %arg6[%c0_18, %c0_19] : memref<128x128xf32, #tpu.memory_space<vmem>>, vector<128x128xf32>
      %cst_20 = arith.constant dense<0.000000e+00> : vector<128x128xf32>
      %22 = tpu.matmul %20, %21, %cst_20 {dimension_numbers = #tpu.dot_dimension_numbers<[1], [0], [0], [1], [0, 0, 1, 1], [], []>} : vector<128x128xf32>, vector<128x128xf32>, vector<128x128xf32> -> vector<128x128xf32>
      %c0_21 = arith.constant 0 : index
      %c0_22 = arith.constant 0 : index
      %23 = vector.load %arg7[%c0_21, %c0_22] : memref<1x128xf32, #tpu.memory_space<vmem>>, vector<1x128xf32>
      %24 = vector.broadcast %23 : vector<1x128xf32> to vector<128x128xf32>
      %25 = arith.addf %22, %24 : vector<128x128xf32>
      %c0_23 = arith.constant 0 : index
      %c0_24 = arith.constant 0 : index
      %26 = vector.load %arg8[%c0_23, %c0_24] : memref<128x128xf32, #tpu.memory_space<vmem>>, vector<128x128xf32>
      tpu.vector_store %arg8[%c0_23, %c0_24], %25 {strides = array<i32>} : memref<128x128xf32, #tpu.memory_space<vmem>>, vector<128x128xf32>,
    } else {
    }
    return
  }
  func.func @transform_0(%arg0: i32, %arg1: i32) -> (i32, i32) {
    %c0_i32 = arith.constant 0 : i32
    return %arg0, %arg1 : i32, i32
  }
  func.func @transform_1(%arg0: i32, %arg1: i32) -> (i32, i32) {
    %c0_i32 = arith.constant 0 : i32
    %c0_i32_0 = arith.constant 0 : i32
    return %arg1, %c0_i32 : i32, i32
  }
  func.func @transform_2(%arg0: i32, %arg1: i32) -> (i32, i32) {
    %c0_i32 = arith.constant 0 : i32
    %c0_i32_0 = arith.constant 0 : i32
    %c0_i32_1 = arith.constant 0 : i32
    return %c0_i32, %c0_i32_0 : i32, i32
  }
  func.func @transform_3(%arg0: i32, %arg1: i32) -> (i32, i32) {
    %c0_i32 = arith.constant 0 : i32
    %c0_i32_0 = arith.constant 0 : i32
    %c0_i32_1 = arith.constant 0 : i32
    return %c0_i32, %c0_i32_0 : i32, i32
  }
  func.func @transform_4(%arg0: i32, %arg1: i32) -> (i32, i32) {
    %c0_i32 = arith.constant 0 : i32
    %c0_i32_0 = arith.constant 0 : i32
    %c0_i32_1 = arith.constant 0 : i32
    return %c0_i32, %c0_i32_0 : i32, i32
  }
  func.func @transform_5(%arg0: i32, %arg1: i32) -> (i32, i32) {
    %c0_i32 = arith.constant 0 : i32
    %c0_i32_0 = arith.constant 0 : i32
    %c0_i32_1 = arith.constant 0 : i32
    return %c0_i32, %c0_i32_0 : i32, i32
  }
  func.func @transform_6(%arg0: i32, %arg1: i32) -> (i32, i32) {
    %c0_i32 = arith.constant 0 : i32
    %c0_i32_0 = arith.constant 0 : i32
    return %arg0, %c0_i32 : i32, i32
  }
}

</mosaic_0001>

<llo_original>
// kernel: tpu_custom_call.1
$region0: #{tpu_custom_call.1}
  #allocation0 [shape = 'u32[]', space=smem, size = 0x4, offset = 0x4, fixed_abs, tag = 'smem constant byte address 0x4 - core index']
  #allocation1 [shape = 'u32[144,128]{1,0:T(1,128)}', space=vmem, size = 0x12000, scoped, tag = 'internal scratch']
  #allocation2 [shape = 'f32[128,128]{1,0:T(8,128)}', space=vmem, size = 0x10000, scoped, tag = 'scratch operand']
  %s0 = inlined_call_operand.hbm [shape: bf16[128,128], index: 0, kind: input, shape index: {}]
  %s1 = inlined_call_operand.hbm [shape: f32[128,128], index: 1, kind: input, shape index: {}]
  %s2 = inlined_call_operand.hbm [shape: f32[128,128], index: 2, kind: input, shape index: {}]
  %s3 = inlined_call_operand.vmem [shape: f32[1,128], index: 3, kind: input, shape index: {}]
  %s4 = inlined_call_operand.hbm [shape: f32[128,128], index: 4, kind: input, shape index: {}]
  %s5 = inlined_call_operand.vmem [shape: f32[1,128], index: 5, kind: input, shape index: {}]
  %s6 = inlined_call_operand.hbm [shape: f32[128,128], index: 6, kind: output, shape index: {}]
  %s7 = sld [smem:[#allocation0]]
  $region58: #{tpu_custom_call.1} parent=0
    _
  %s9 = ssub.s32 1, %s7
  %s10 = scalar_select 0, %s9, %s7
  $region1: #{tpu_custom_call.1} parent=0
    #allocation3 [shape = 'u8[32768]{0}', space=vmem, size = 0x8000, scoped, tag = 'input window, operand 0, single buffered']
    #allocation4 [shape = 's32[1]{0}', space=sflag, size = 0x4, scoped, tag = 'scoped memory for tpu_custom_call.1']
    #allocation5 [shape = 's32[1]{0}', space=sflag, size = 0x4, scoped, tag = 'scoped memory for tpu_custom_call.1']
    #allocation6 [shape = 'u8[65536]{0}', space=vmem, size = 0x10000, scoped, tag = 'input window, operand 1, single buffered']
    #allocation7 [shape = 's32[1]{0}', space=sflag, size = 0x4, scoped, tag = 'scoped memory for tpu_custom_call.1']
    #allocation8 [shape = 'u8[65536]{0}', space=vmem, size = 0x10000, scoped, tag = 'input window, operand 2, single buffered']
    #allocation9 [shape = 'u8[65536]{0}', space=vmem, size = 0x10000, scoped, tag = 'input window, operand 4, single buffered']
    #allocation10 [shape = 's32[1]{0}', space=sflag, size = 0x4, scoped, tag = 'scoped memory for tpu_custom_call.1']
    #allocation11 [shape = 'u8[65536]{0}', space=vmem, size = 0x10000, scoped, tag = 'output window, operand 0, single buffered']
    %11 = vsyncpa [#allocation4], 0
    %12 = vsyncpa [#allocation7], 0
    %13 = vsyncpa [#allocation10], 0
    %14 = vsyncpa [#allocation5], 0
    // Predicated region
    $region2: #{tpu_custom_call.1} parent=1 // pred_check
      _
    $region3: #{tpu_custom_call.1} parent=1 // pred_check_branch
      %16 = sbr.rel (0) target = $region5
    $region4: #{tpu_custom_call.1} parent=1 // pred_region
      %s18 = ssub.s32 1024, 1024
      %19 = vsyncadd [#allocation4], %s18
      %s20 = sshll.u32 [#allocation3], 4
      %s21 = int_to_ptr.vmem [resolvable:$true] %s20
      %26 = dma.hbm_to_vmem [thread:$0]  %s0, 1024, %s21, [#allocation4], 64, 64, 4
    $region5: #{tpu_custom_call.1} parent=1 // pred_fallthru
      _
    // Predicated region
    $region6: #{tpu_custom_call.1} parent=1 // pred_check
      _
    $region7: #{tpu_custom_call.1} parent=1 // pred_check_branch
      %28 = sbr.rel (0) target = $region9
    $region8: #{tpu_custom_call.1} parent=1 // pred_region
      %s30 = ssub.s32 2048, 2048
      %31 = vsyncadd [#allocation7], %s30
      %s32 = sshll.u32 [#allocation6], 4
      %s33 = int_to_ptr.vmem [resolvable:$true] %s32
      %38 = dma.hbm_to_vmem [thread:$0]  %s1, 2048, %s33, [#allocation7], 128, 128, 8
    $region9: #{tpu_custom_call.1} parent=1 // pred_fallthru
      _
    // Predicated region
    $region10: #{tpu_custom_call.1} parent=1 // pred_check
      _
    $region11: #{tpu_custom_call.1} parent=1 // pred_check_branch
      %40 = sbr.rel (0) target = $region13
    $region12: #{tpu_custom_call.1} parent=1 // pred_region
      %s42 = ssub.s32 2048, 2048
      %43 = vsyncadd [#allocation7], %s42
      %s44 = sshll.u32 [#allocation8], 4
      %s45 = int_to_ptr.vmem [resolvable:$true] %s44
      %50 = dma.hbm_to_vmem [thread:$0]  %s2, 2048, %s45, [#allocation7], 128, 128, 8
    $region13: #{tpu_custom_call.1} parent=1 // pred_fallthru
      _
    // Predicated region
    $region14: #{tpu_custom_call.1} parent=1 // pred_check
      _
    $region15: #{tpu_custom_call.1} parent=1 // pred_check_branch
      %52 = sbr.rel (0) target = $region17
    $region16: #{tpu_custom_call.1} parent=1 // pred_region
      _
    $region17: #{tpu_custom_call.1} parent=1 // pred_fallthru
      _
    // Predicated region
    $region18: #{tpu_custom_call.1} parent=1 // pred_check
      _
    $region19: #{tpu_custom_call.1} parent=1 // pred_check_branch
      %54 = sbr.rel (0) target = $region21
    $region20: #{tpu_custom_call.1} parent=1 // pred_region
      %s56 = ssub.s32 2048, 2048
      %57 = vsyncadd [#allocation10], %s56
      %s58 = sshll.u32 [#allocation9], 4
      %s59 = int_to_ptr.vmem [resolvable:$true] %s58
      %64 = dma.hbm_to_vmem [thread:$0]  %s4, 2048, %s59, [#allocation10], 128, 128, 8
    $region21: #{tpu_custom_call.1} parent=1 // pred_fallthru
      _
    // Predicated region
    $region22: #{tpu_custom_call.1} parent=1 // pred_check
      _
    $region23: #{tpu_custom_call.1} parent=1 // pred_check_branch
      %66 = sbr.rel (0) target = $region25
    $region24: #{tpu_custom_call.1} parent=1 // pred_region
      _
    $region25: #{tpu_custom_call.1} parent=1 // pred_fallthru
      _
    // Predicated region
    $region26: #{tpu_custom_call.1} parent=1 // pred_check
      _
    $region27: #{tpu_custom_call.1} parent=1 // pred_check_branch
      %68 = sbr.rel (0) target = $region29
    $region28: #{tpu_custom_call.1} parent=1 // pred_region
      %69 = dma.done [#allocation4], 1024
    $region29: #{tpu_custom_call.1} parent=1 // pred_fallthru
      _
    // Predicated region
    $region30: #{tpu_custom_call.1} parent=1 // pred_check
      _
    $region31: #{tpu_custom_call.1} parent=1 // pred_check_branch
      %71 = sbr.rel (0) target = $region33
    $region32: #{tpu_custom_call.1} parent=1 // pred_region
      %72 = dma.done [#allocation7], 2048
    $region33: #{tpu_custom_call.1} parent=1 // pred_fallthru
      _
    // Predicated region
    $region34: #{tpu_custom_call.1} parent=1 // pred_check
      _
    $region35: #{tpu_custom_call.1} parent=1 // pred_check_branch
      %74 = sbr.rel (0) target = $region37
    $region36: #{tpu_custom_call.1} parent=1 // pred_region
      %75 = dma.done [#allocation7], 2048
    $region37: #{tpu_custom_call.1} parent=1 // pred_fallthru
      _
    // Predicated region
    $region38: #{tpu_custom_call.1} parent=1 // pred_check
      _
    $region39: #{tpu_custom_call.1} parent=1 // pred_check_branch
      %77 = sbr.rel (0) target = $region41
    $region40: #{tpu_custom_call.1} parent=1 // pred_region
      %78 = dma.done [#allocation10], 2048
    $region41: #{tpu_custom_call.1} parent=1 // pred_fallthru
      _
    %p79 = scmp.eq.s32.totalorder 0, 0
    // Predicated region
    $region42: #{tpu_custom_call.1} parent=1 // pred_check
      %p80 = pneg %p79
    $region43: #{tpu_custom_call.1} parent=1 // pred_check_branch
      %82 = sbr.rel (%p80) target = $region45
    $region44: #{tpu_custom_call.1} parent=1 // pred_region
      %83 = vst [vmem:[#allocation2] sm:$0xff] 0.0
      %84 = vst [vmem:[#allocation2 + $0x8] sm:$0xff] 0.0
      %85 = vst [vmem:[#allocation2 + $0x10] sm:$0xff] 0.0
      %86 = vst [vmem:[#allocation2 + $0x18] sm:$0xff] 0.0
      %87 = vst [vmem:[#allocation2 + $0x20] sm:$0xff] 0.0
      %88 = vst [vmem:[#allocation2 + $0x28] sm:$0xff] 0.0
      %89 = vst [vmem:[#allocation2 + $0x30] sm:$0xff] 0.0
      %90 = vst [vmem:[#allocation2 + $0x38] sm:$0xff] 0.0
      %91 = vst [vmem:[#allocation2 + $0x40] sm:$0xff] 0.0
      %92 = vst [vmem:[#allocation2 + $0x48] sm:$0xff] 0.0
      %93 = vst [vmem:[#allocation2 + $0x50] sm:$0xff] 0.0
      %94 = vst [vmem:[#allocation2 + $0x58] sm:$0xff] 0.0
      %95 = vst [vmem:[#allocation2 + $0x60] sm:$0xff] 0.0
      %96 = vst [vmem:[#allocation2 + $0x68] sm:$0xff] 0.0
      %97 = vst [vmem:[#allocation2 + $0x70] sm:$0xff] 0.0
      %98 = vst [vmem:[#allocation2 + $0x78] sm:$0xff] 0.0
    $region45: #{tpu_custom_call.1} parent=1 // pred_fallthru
      _
    %v99 = vld [vmem:[#allocation2] sm:$0xff]
    %v100 = vld [vmem:[#allocation2 + $0x8] sm:$0xff]
    %v101 = vld [vmem:[#allocation2 + $0x10] sm:$0xff]
    %v102 = vld [vmem:[#allocation2 + $0x18] sm:$0xff]
    %v103 = vld [vmem:[#allocation2 + $0x20] sm:$0xff]
    %v104 = vld [vmem:[#allocation2 + $0x28] sm:$0xff]
    %v105 = vld [vmem:[#allocation2 + $0x30] sm:$0xff]
    %v106 = vld [vmem:[#allocation2 + $0x38] sm:$0xff]
    %v107 = vld [vmem:[#allocation2 + $0x40] sm:$0xff]
    %v108 = vld [vmem:[#allocation2 + $0x48] sm:$0xff]
    %v109 = vld [vmem:[#allocation2 + $0x50] sm:$0xff]
    %v110 = vld [vmem:[#allocation2 + $0x58] sm:$0xff]
    %v111 = vld [vmem:[#allocation2 + $0x60] sm:$0xff]
    %v112 = vld [vmem:[#allocation2 + $0x68] sm:$0xff]
    %v113 = vld [vmem:[#allocation2 + $0x70] sm:$0xff]
    %v114 = vld [vmem:[#allocation2 + $0x78] sm:$0xff]
    %v115 = vld [vmem:[#allocation3] sm:$0xf]
    %v116 = vld [vmem:[#allocation3 + $0x4] sm:$0xf]
    %v117 = vld [vmem:[#allocation3 + $0x8] sm:$0xf]
    %v118 = vld [vmem:[#allocation3 + $0xc] sm:$0xf]
    %v119 = vld [vmem:[#allocation3 + $0x10] sm:$0xf]
    %v120 = vld [vmem:[#allocation3 + $0x14] sm:$0xf]
    %v121 = vld [vmem:[#allocation3 + $0x18] sm:$0xf]
    %v122 = vld [vmem:[#allocation3 + $0x1c] sm:$0xf]
    %v123 = vld [vmem:[#allocation3 + $0x20] sm:$0xf]
    %v124 = vld [vmem:[#allocation3 + $0x24] sm:$0xf]
    %v125 = vld [vmem:[#allocation3 + $0x28] sm:$0xf]
    %v126 = vld [vmem:[#allocation3 + $0x2c] sm:$0xf]
    %v127 = vld [vmem:[#allocation3 + $0x30] sm:$0xf]
    %v128 = vld [vmem:[#allocation3 + $0x34] sm:$0xf]
    %v129 = vld [vmem:[#allocation3 + $0x38] sm:$0xf]
    %v130 = vld [vmem:[#allocation3 + $0x3c] sm:$0xf]
    %v131 = vunpack.c.l.bf16 %v115
    %v132 = vunpack.c.l.bf16 %v116
    %v133 = vunpack.c.l.bf16 %v117
    %v134 = vunpack.c.l.bf16 %v118
    %v135 = vunpack.c.l.bf16 %v119
    %v136 = vunpack.c.l.bf16 %v120
    %v137 = vunpack.c.l.bf16 %v121
    %v138 = vunpack.c.l.bf16 %v122
    %v139 = vunpack.c.l.bf16 %v123
    %v140 = vunpack.c.l.bf16 %v124
    %v141 = vunpack.c.l.bf16 %v125
    %v142 = vunpack.c.l.bf16 %v126
    %v143 = vunpack.c.l.bf16 %v127
    %v144 = vunpack.c.l.bf16 %v128
    %v145 = vunpack.c.l.bf16 %v129
    %v146 = vunpack.c.l.bf16 %v130
    %v147 = vld [vmem:[#allocation6] sm:$0xff]
    %v148 = vld [vmem:[#allocation6 + $0x8] sm:$0xff]
    %v149 = vld [vmem:[#allocation6 + $0x10] sm:$0xff]
    %v150 = vld [vmem:[#allocation6 + $0x18] sm:$0xff]
    %v151 = vld [vmem:[#allocation6 + $0x20] sm:$0xff]
    %v152 = vld [vmem:[#allocation6 + $0x28] sm:$0xff]
    %v153 = vld [vmem:[#allocation6 + $0x30] sm:$0xff]
    %v154 = vld [vmem:[#allocation6 + $0x38] sm:$0xff]
    %v155 = vld [vmem:[#allocation6 + $0x40] sm:$0xff]
    %v156 = vld [vmem:[#allocation6 + $0x48] sm:$0xff]
    %v157 = vld [vmem:[#allocation6 + $0x50] sm:$0xff]
    %v158 = vld [vmem:[#allocation6 + $0x58] sm:$0xff]
    %v159 = vld [vmem:[#allocation6 + $0x60] sm:$0xff]
    %v160 = vld [vmem:[#allocation6 + $0x68] sm:$0xff]
    %v161 = vld [vmem:[#allocation6 + $0x70] sm:$0xff]
    %v162 = vld [vmem:[#allocation6 + $0x78] sm:$0xff]
    %163 = vmatprep.subr.mxu0 0.0
    %164 = vmatpush1.msra.mxu0 %v147
    %165 = vmatprep.subr.mxu0 0.0
    %166 = vmatpush1.msra.mxu0 %v148
    %167 = vmatprep.subr.mxu0 0.0
    %168 = vmatpush1.msra.mxu0 %v149
    %169 = vmatprep.subr.mxu0 0.0
    %170 = vmatpush1.msra.mxu0 %v150
    %171 = vmatprep.subr.mxu0 0.0
    %172 = vmatpush1.msra.mxu0 %v151
    %173 = vmatprep.subr.mxu0 0.0
    %174 = vmatpush1.msra.mxu0 %v152
    %175 = vmatprep.subr.mxu0 0.0
    %176 = vmatpush1.msra.mxu0 %v153
    %177 = vmatprep.subr.mxu0 0.0
    %178 = vmatpush1.msra.mxu0 %v154
    %179 = vmatprep.subr.mxu0 0.0
    %180 = vmatpush1.msra.mxu0 %v155
    %181 = vmatprep.subr.mxu0 0.0
    %182 = vmatpush1.msra.mxu0 %v156
    %183 = vmatprep.subr.mxu0 0.0
    %184 = vmatpush1.msra.mxu0 %v157
    %185 = vmatprep.subr.mxu0 0.0
    %186 = vmatpush1.msra.mxu0 %v158
    %187 = vmatprep.subr.mxu0 0.0
    %188 = vmatpush1.msra.mxu0 %v159
    %189 = vmatprep.subr.mxu0 0.0
    %190 = vmatpush1.msra.mxu0 %v160
    %191 = vmatprep.subr.mxu0 0.0
    %192 = vmatpush1.msra.mxu0 %v161
    %193 = vmatprep.subr.mxu0 0.0
    %194 = vmatpush1.msra.mxu0 %v162
    %195 = vmatprep.subr.mxu0 0.0
    %196 = vmatpush1.msra.mxu0 0.0
    %197 = vmatprep.subr.mxu0 0.0
    %198 = vmatpush1.msra.mxu0 0.0
    %199 = vmatprep.subr.mxu0 0.0
    %200 = vmatpush1.msra.mxu0 0.0
    %201 = vmatprep.subr.mxu0 0.0
    %202 = vmatpush1.msra.mxu0 0.0
    %203 = vmatprep.subr.mxu0 0.0
    %204 = vmatpush1.msra.mxu0 0.0
    %205 = vmatprep.subr.mxu0 0.0
    %206 = vmatpush1.msra.mxu0 0.0
    %207 = vmatprep.subr.mxu0 0.0
    %208 = vmatpush1.msra.mxu0 0.0
    %209 = vmatprep.subr.mxu0 0.0
    %210 = vmatpush1.msra.mxu0 0.0
    %211 = vmatprep.subr.mxu0 0.0
    %212 = vmatpush1.msra.mxu0 0.0
    %213 = vmatprep.subr.mxu0 0.0
    %214 = vmatpush1.msra.mxu0 0.0
    %215 = vmatprep.subr.mxu0 0.0
    %216 = vmatpush1.msra.mxu0 0.0
    %217 = vmatprep.subr.mxu0 0.0
    %218 = vmatpush1.msra.mxu0 0.0
    %219 = vmatprep.subr.mxu0 0.0
    %220 = vmatpush1.msra.mxu0 0.0
    %221 = vmatprep.subr.mxu0 0.0
    %222 = vmatpush1.msra.mxu0 0.0
    %223 = vmatprep.subr.mxu0 0.0
    %224 = vmatpush1.msra.mxu0 0.0
    %225 = vmatprep.subr.mxu0 0.0
    %226 = vmatpush1.msra.mxu0 0.0
    %227 = vmatprep.mubr.f32.mxu0 0.0
    %228 = vmatmul.mubr.f32.gmra.mrb[0].mxu0 %v131
    %v229 = vpop.f32.mrb[0].mxu0
    %v230 = vadd.f32 0.0, %v229
    %v231 = vpop.f32.mrb[0].mxu0
    %232 = vmatprep.mubr.f32.mxu0 0.0
    %233 = vmatmul.mubr.f32.gmra.mrb[0].mxu0 %v132
    %v234 = vpop.f32.mrb[0].mxu0
    %v235 = vadd.f32 0.0, %v234
    %v236 = vpop.f32.mrb[0].mxu0
    %237 = vmatprep.mubr.f32.mxu0 0.0
    %238 = vmatmul.mubr.f32.gmra.mrb[0].mxu0 %v133
    %v239 = vpop.f32.mrb[0].mxu0
    %v240 = vadd.f32 0.0, %v239
    %v241 = vpop.f32.mrb[0].mxu0
    %242 = vmatprep.mubr.f32.mxu0 0.0
    %243 = vmatmul.mubr.f32.gmra.mrb[0].mxu0 %v134
    %v244 = vpop.f32.mrb[0].mxu0
    %v245 = vadd.f32 0.0, %v244
    %v246 = vpop.f32.mrb[0].mxu0
    %247 = vmatprep.mubr.f32.mxu0 0.0
    %248 = vmatmul.mubr.f32.gmra.mrb[0].mxu0 %v135
    %v249 = vpop.f32.mrb[0].mxu0
    %v250 = vadd.f32 0.0, %v249
    %v251 = vpop.f32.mrb[0].mxu0
    %252 = vmatprep.mubr.f32.mxu0 0.0
    %253 = vmatmul.mubr.f32.gmra.mrb[0].mxu0 %v136
    %v254 = vpop.f32.mrb[0].mxu0
    %v255 = vadd.f32 0.0, %v254
    %v256 = vpop.f32.mrb[0].mxu0
    %257 = vmatprep.mubr.f32.mxu0 0.0
    %258 = vmatmul.mubr.f32.gmra.mrb[0].mxu0 %v137
    %v259 = vpop.f32.mrb[0].mxu0
    %v260 = vadd.f32 0.0, %v259
    %v261 = vpop.f32.mrb[0].mxu0
    %262 = vmatprep.mubr.f32.mxu0 0.0
    %263 = vmatmul.mubr.f32.gmra.mrb[0].mxu0 %v138
    %v264 = vpop.f32.mrb[0].mxu0
    %v265 = vadd.f32 0.0, %v264
    %v266 = vpop.f32.mrb[0].mxu0
    %267 = vmatprep.mubr.f32.mxu0 0.0
    %268 = vmatmul.mubr.f32.gmra.mrb[0].mxu0 %v139
    %v269 = vpop.f32.mrb[0].mxu0
    %v270 = vadd.f32 0.0, %v269
    %v271 = vpop.f32.mrb[0].mxu0
    %272 = vmatprep.mubr.f32.mxu0 0.0
    %273 = vmatmul.mubr.f32.gmra.mrb[0].mxu0 %v140
    %v274 = vpop.f32.mrb[0].mxu0
    %v275 = vadd.f32 0.0, %v274
    %v276 = vpop.f32.mrb[0].mxu0
    %277 = vmatprep.mubr.f32.mxu0 0.0
    %278 = vmatmul.mubr.f32.gmra.mrb[0].mxu0 %v141
    %v279 = vpop.f32.mrb[0].mxu0
    %v280 = vadd.f32 0.0, %v279
    %v281 = vpop.f32.mrb[0].mxu0
    %282 = vmatprep.mubr.f32.mxu0 0.0
    %283 = vmatmul.mubr.f32.gmra.mrb[0].mxu0 %v142
    %v284 = vpop.f32.mrb[0].mxu0
    %v285 = vadd.f32 0.0, %v284
    %v286 = vpop.f32.mrb[0].mxu0
    %287 = vmatprep.mubr.f32.mxu0 0.0
    %288 = vmatmul.mubr.f32.gmra.mrb[0].mxu0 %v143
    %v289 = vpop.f32.mrb[0].mxu0
    %v290 = vadd.f32 0.0, %v289
    %v291 = vpop.f32.mrb[0].mxu0
    %292 = vmatprep.mubr.f32.mxu0 0.0
    %293 = vmatmul.mubr.f32.gmra.mrb[0].mxu0 %v144
    %v294 = vpop.f32.mrb[0].mxu0
    %v295 = vadd.f32 0.0, %v294
    %v296 = vpop.f32.mrb[0].mxu0
    %297 = vmatprep.mubr.f32.mxu0 0.0
    %298 = vmatmul.mubr.f32.gmra.mrb[0].mxu0 %v145
    %v299 = vpop.f32.mrb[0].mxu0
    %v300 = vadd.f32 0.0, %v299
    %v301 = vpop.f32.mrb[0].mxu0
    %302 = vmatprep.mubr.f32.mxu0 0.0
    %303 = vmatmul.mubr.f32.gmra.mrb[0].mxu0 %v146
    %v304 = vpop.f32.mrb[0].mxu0
    %v305 = vadd.f32 0.0, %v304
    %v306 = vpop.f32.mrb[0].mxu0
    %307 = vdwg.mxu0
    %v308 = vadd.f32 %v99, %v230
    %v309 = vadd.f32 %v100, %v235
    %v310 = vadd.f32 %v101, %v240
    %v311 = vadd.f32 %v102, %v245
    %v312 = vadd.f32 %v103, %v250
    %v313 = vadd.f32 %v104, %v255
    %v314 = vadd.f32 %v105, %v260
    %v315 = vadd.f32 %v106, %v265
    %v316 = vadd.f32 %v107, %v270
    %v317 = vadd.f32 %v108, %v275
    %v318 = vadd.f32 %v109, %v280
    %v319 = vadd.f32 %v110, %v285
    %v320 = vadd.f32 %v111, %v290
    %v321 = vadd.f32 %v112, %v295
    %v322 = vadd.f32 %v113, %v300
    %v323 = vadd.f32 %v114, %v305
    %324 = vst [vmem:[#allocation2] sm:$0xff] %v308
    %325 = vst [vmem:[#allocation2 + $0x8] sm:$0xff] %v309
    %326 = vst [vmem:[#allocation2 + $0x10] sm:$0xff] %v310
    %327 = vst [vmem:[#allocation2 + $0x18] sm:$0xff] %v311
    %328 = vst [vmem:[#allocation2 + $0x20] sm:$0xff] %v312
    %329 = vst [vmem:[#allocation2 + $0x28] sm:$0xff] %v313
    %330 = vst [vmem:[#allocation2 + $0x30] sm:$0xff] %v314
    %331 = vst [vmem:[#allocation2 + $0x38] sm:$0xff] %v315
    %332 = vst [vmem:[#allocation2 + $0x40] sm:$0xff] %v316
    %333 = vst [vmem:[#allocation2 + $0x48] sm:$0xff] %v317
    %334 = vst [vmem:[#allocation2 + $0x50] sm:$0xff] %v318
    %335 = vst [vmem:[#allocation2 + $0x58] sm:$0xff] %v319
    %336 = vst [vmem:[#allocation2 + $0x60] sm:$0xff] %v320
    %337 = vst [vmem:[#allocation2 + $0x68] sm:$0xff] %v321
    %338 = vst [vmem:[#allocation2 + $0x70] sm:$0xff] %v322
    %339 = vst [vmem:[#allocation2 + $0x78] sm:$0xff] %v323
    // Predicated region
    $region46: #{tpu_custom_call.1} parent=1 // pred_check
      %p340 = pneg %p79
    $region47: #{tpu_custom_call.1} parent=1 // pred_check_branch
      %342 = sbr.rel (%p340) target = $region49
    $region48: #{tpu_custom_call.1} parent=1 // pred_region
      %v343 = vld [vmem:[#allocation2] sm:$0xff]
      %v344 = vld [vmem:[#allocation2 + $0x8] sm:$0xff]
      %v345 = vld [vmem:[#allocation2 + $0x10] sm:$0xff]
      %v346 = vld [vmem:[#allocation2 + $0x18] sm:$0xff]
      %v347 = vld [vmem:[#allocation2 + $0x20] sm:$0xff]
      %v348 = vld [vmem:[#allocation2 + $0x28] sm:$0xff]
      %v349 = vld [vmem:[#allocation2 + $0x30] sm:$0xff]
      %v350 = vld [vmem:[#allocation2 + $0x38] sm:$0xff]
      %v351 = vld [vmem:[#allocation2 + $0x40] sm:$0xff]
      %v352 = vld [vmem:[#allocation2 + $0x48] sm:$0xff]
      %v353 = vld [vmem:[#allocation2 + $0x50] sm:$0xff]
      %v354 = vld [vmem:[#allocation2 + $0x58] sm:$0xff]
      %v355 = vld [vmem:[#allocation2 + $0x60] sm:$0xff]
      %v356 = vld [vmem:[#allocation2 + $0x68] sm:$0xff]
      %v357 = vld [vmem:[#allocation2 + $0x70] sm:$0xff]
      %v358 = vld [vmem:[#allocation2 + $0x78] sm:$0xff]
      %v359 = vld [vmem:[#allocation8] sm:$0xff]
      %v360 = vld [vmem:[#allocation8 + $0x8] sm:$0xff]
      %v361 = vld [vmem:[#allocation8 + $0x10] sm:$0xff]
      %v362 = vld [vmem:[#allocation8 + $0x18] sm:$0xff]
      %v363 = vld [vmem:[#allocation8 + $0x20] sm:$0xff]
      %v364 = vld [vmem:[#allocation8 + $0x28] sm:$0xff]
      %v365 = vld [vmem:[#allocation8 + $0x30] sm:$0xff]
      %v366 = vld [vmem:[#allocation8 + $0x38] sm:$0xff]
      %v367 = vld [vmem:[#allocation8 + $0x40] sm:$0xff]
      %v368 = vld [vmem:[#allocation8 + $0x48] sm:$0xff]
      %v369 = vld [vmem:[#allocation8 + $0x50] sm:$0xff]
      %v370 = vld [vmem:[#allocation8 + $0x58] sm:$0xff]
      %v371 = vld [vmem:[#allocation8 + $0x60] sm:$0xff]
      %v372 = vld [vmem:[#allocation8 + $0x68] sm:$0xff]
      %v373 = vld [vmem:[#allocation8 + $0x70] sm:$0xff]
      %v374 = vld [vmem:[#allocation8 + $0x78] sm:$0xff]
      %v375 = vld [vmem:[%s3] sm:$0x1]
      %v377 = vlaneseq
      %v378 = vshrl.u32 %v377, 7
      %v379 = vsub.s32 0, %v378
      %v380 = vrot.slane %v375, %v379
      %382 = vmatprep.subr.mxu0 0.0
      %383 = vmatpush1.msra.mxu0 %v359
      %384 = vmatprep.subr.mxu0 0.0
      %385 = vmatpush1.msra.mxu0 %v360
      %386 = vmatprep.subr.mxu0 0.0
      %387 = vmatpush1.msra.mxu0 %v361
      %388 = vmatprep.subr.mxu0 0.0
      %389 = vmatpush1.msra.mxu0 %v362
      %390 = vmatprep.subr.mxu0 0.0
      %391 = vmatpush1.msra.mxu0 %v363
      %392 = vmatprep.subr.mxu0 0.0
      %393 = vmatpush1.msra.mxu0 %v364
      %394 = vmatprep.subr.mxu0 0.0
      %395 = vmatpush1.msra.mxu0 %v365
      %396 = vmatprep.subr.mxu0 0.0
      %397 = vmatpush1.msra.mxu0 %v366
      %398 = vmatprep.subr.mxu0 0.0
      %399 = vmatpush1.msra.mxu0 %v367
      %400 = vmatprep.subr.mxu0 0.0
      %401 = vmatpush1.msra.mxu0 %v368
      %402 = vmatprep.subr.mxu0 0.0
      %403 = vmatpush1.msra.mxu0 %v369
      %404 = vmatprep.subr.mxu0 0.0
      %405 = vmatpush1.msra.mxu0 %v370
      %406 = vmatprep.subr.mxu0 0.0
      %407 = vmatpush1.msra.mxu0 %v371
      %408 = vmatprep.subr.mxu0 0.0
      %409 = vmatpush1.msra.mxu0 %v372
      %410 = vmatprep.subr.mxu0 0.0
      %411 = vmatpush1.msra.mxu0 %v373
      %412 = vmatprep.subr.mxu0 0.0
      %413 = vmatpush1.msra.mxu0 %v374
      %414 = vmatprep.subr.mxu0 0.0
      %415 = vmatpush1.msra.mxu0 0.0
      %416 = vmatprep.subr.mxu0 0.0
      %417 = vmatpush1.msra.mxu0 0.0
      %418 = vmatprep.subr.mxu0 0.0
      %419 = vmatpush1.msra.mxu0 0.0
      %420 = vmatprep.subr.mxu0 0.0
      %421 = vmatpush1.msra.mxu0 0.0
      %422 = vmatprep.subr.mxu0 0.0
      %423 = vmatpush1.msra.mxu0 0.0
      %424 = vmatprep.subr.mxu0 0.0
      %425 = vmatpush1.msra.mxu0 0.0
      %426 = vmatprep.subr.mxu0 0.0
      %427 = vmatpush1.msra.mxu0 0.0
      %428 = vmatprep.subr.mxu0 0.0
      %429 = vmatpush1.msra.mxu0 0.0
      %430 = vmatprep.subr.mxu0 0.0
      %431 = vmatpush1.msra.mxu0 0.0
      %432 = vmatprep.subr.mxu0 0.0
      %433 = vmatpush1.msra.mxu0 0.0
      %434 = vmatprep.subr.mxu0 0.0
      %435 = vmatpush1.msra.mxu0 0.0
      %436 = vmatprep.subr.mxu0 0.0
      %437 = vmatpush1.msra.mxu0 0.0
      %438 = vmatprep.subr.mxu0 0.0
      %439 = vmatpush1.msra.mxu0 0.0
      %440 = vmatprep.subr.mxu0 0.0
      %441 = vmatpush1.msra.mxu0 0.0
      %442 = vmatprep.subr.mxu0 0.0
      %443 = vmatpush1.msra.mxu0 0.0
      %444 = vmatprep.subr.mxu0 0.0
      %445 = vmatpush1.msra.mxu0 0.0
      %446 = vmatprep.mubr.f32.mxu0 0.0
      %447 = vmatmul.mubr.f32.gmra.mrb[0].mxu0 %v343
      %v448 = vpop.f32.mrb[0].mxu0
      %v449 = vadd.f32 %v380, %v448
      %v450 = vpop.f32.mrb[0].mxu0
      %451 = vmatprep.mubr.f32.mxu0 0.0
      %452 = vmatmul.mubr.f32.gmra.mrb[0].mxu0 %v344
      %v453 = vpop.f32.mrb[0].mxu0
      %v454 = vadd.f32 %v380, %v453
      %v455 = vpop.f32.mrb[0].mxu0
      %456 = vmatprep.mubr.f32.mxu0 0.0
      %457 = vmatmul.mubr.f32.gmra.mrb[0].mxu0 %v345
      %v458 = vpop.f32.mrb[0].mxu0
      %v459 = vadd.f32 %v380, %v458
      %v460 = vpop.f32.mrb[0].mxu0
      %461 = vmatprep.mubr.f32.mxu0 0.0
      %462 = vmatmul.mubr.f32.gmra.mrb[0].mxu0 %v346
      %v463 = vpop.f32.mrb[0].mxu0
      %v464 = vadd.f32 %v380, %v463
      %v465 = vpop.f32.mrb[0].mxu0
      %466 = vmatprep.mubr.f32.mxu0 0.0
      %467 = vmatmul.mubr.f32.gmra.mrb[0].mxu0 %v347
      %v468 = vpop.f32.mrb[0].mxu0
      %v469 = vadd.f32 %v380, %v468
      %v470 = vpop.f32.mrb[0].mxu0
      %471 = vmatprep.mubr.f32.mxu0 0.0
      %472 = vmatmul.mubr.f32.gmra.mrb[0].mxu0 %v348
      %v473 = vpop.f32.mrb[0].mxu0
      %v474 = vadd.f32 %v380, %v473
      %v475 = vpop.f32.mrb[0].mxu0
      %476 = vmatprep.mubr.f32.mxu0 0.0
      %477 = vmatmul.mubr.f32.gmra.mrb[0].mxu0 %v349
      %v478 = vpop.f32.mrb[0].mxu0
      %v479 = vadd.f32 %v380, %v478
      %v480 = vpop.f32.mrb[0].mxu0
      %481 = vmatprep.mubr.f32.mxu0 0.0
      %482 = vmatmul.mubr.f32.gmra.mrb[0].mxu0 %v350
      %v483 = vpop.f32.mrb[0].mxu0
      %v484 = vadd.f32 %v380, %v483
      %v485 = vpop.f32.mrb[0].mxu0
      %486 = vmatprep.mubr.f32.mxu0 0.0
      %487 = vmatmul.mubr.f32.gmra.mrb[0].mxu0 %v351
      %v488 = vpop.f32.mrb[0].mxu0
      %v489 = vadd.f32 %v380, %v488
      %v490 = vpop.f32.mrb[0].mxu0
      %491 = vmatprep.mubr.f32.mxu0 0.0
      %492 = vmatmul.mubr.f32.gmra.mrb[0].mxu0 %v352
      %v493 = vpop.f32.mrb[0].mxu0
      %v494 = vadd.f32 %v380, %v493
      %v495 = vpop.f32.mrb[0].mxu0
      %496 = vmatprep.mubr.f32.mxu0 0.0
      %497 = vmatmul.mubr.f32.gmra.mrb[0].mxu0 %v353
      %v498 = vpop.f32.mrb[0].mxu0
      %v499 = vadd.f32 %v380, %v498
      %v500 = vpop.f32.mrb[0].mxu0
      %501 = vmatprep.mubr.f32.mxu0 0.0
      %502 = vmatmul.mubr.f32.gmra.mrb[0].mxu0 %v354
      %v503 = vpop.f32.mrb[0].mxu0
      %v504 = vadd.f32 %v380, %v503
      %v505 = vpop.f32.mrb[0].mxu0
      %506 = vmatprep.mubr.f32.mxu0 0.0
      %507 = vmatmul.mubr.f32.gmra.mrb[0].mxu0 %v355
      %v508 = vpop.f32.mrb[0].mxu0
      %v509 = vadd.f32 %v380, %v508
      %v510 = vpop.f32.mrb[0].mxu0
      %511 = vmatprep.mubr.f32.mxu0 0.0
      %512 = vmatmul.mubr.f32.gmra.mrb[0].mxu0 %v356
      %v513 = vpop.f32.mrb[0].mxu0
      %v514 = vadd.f32 %v380, %v513
      %v515 = vpop.f32.mrb[0].mxu0
      %516 = vmatprep.mubr.f32.mxu0 0.0
      %517 = vmatmul.mubr.f32.gmra.mrb[0].mxu0 %v357
      %v518 = vpop.f32.mrb[0].mxu0
      %v519 = vadd.f32 %v380, %v518
      %v520 = vpop.f32.mrb[0].mxu0
      %521 = vmatprep.mubr.f32.mxu0 0.0
      %522 = vmatmul.mubr.f32.gmra.mrb[0].mxu0 %v358
      %v523 = vpop.f32.mrb[0].mxu0
      %v524 = vadd.f32 %v380, %v523
      %v525 = vpop.f32.mrb[0].mxu0
      %526 = vdwg.mxu0
      %v527 = vmax.f32 %v449, 0.0
      %v528 = vmax.f32 %v454, 0.0
      %v529 = vmax.f32 %v459, 0.0
      %v530 = vmax.f32 %v464, 0.0
      %v531 = vmax.f32 %v469, 0.0
      %v532 = vmax.f32 %v474, 0.0
      %v533 = vmax.f32 %v479, 0.0
      %v534 = vmax.f32 %v484, 0.0
      %v535 = vmax.f32 %v489, 0.0
      %v536 = vmax.f32 %v494, 0.0
      %v537 = vmax.f32 %v499, 0.0
      %v538 = vmax.f32 %v504, 0.0
      %v539 = vmax.f32 %v509, 0.0
      %v540 = vmax.f32 %v514, 0.0
      %v541 = vmax.f32 %v519, 0.0
      %v542 = vmax.f32 %v524, 0.0
      %v543 = vld [vmem:[#allocation9] sm:$0xff]
      %v544 = vld [vmem:[#allocation9 + $0x8] sm:$0xff]
      %v545 = vld [vmem:[#allocation9 + $0x10] sm:$0xff]
      %v546 = vld [vmem:[#allocation9 + $0x18] sm:$0xff]
      %v547 = vld [vmem:[#allocation9 + $0x20] sm:$0xff]
      %v548 = vld [vmem:[#allocation9 + $0x28] sm:$0xff]
      %v549 = vld [vmem:[#allocation9 + $0x30] sm:$0xff]
      %v550 = vld [vmem:[#allocation9 + $0x38] sm:$0xff]
      %v551 = vld [vmem:[#allocation9 + $0x40] sm:$0xff]
      %v552 = vld [vmem:[#allocation9 + $0x48] sm:$0xff]
      %v553 = vld [vmem:[#allocation9 + $0x50] sm:$0xff]
      %v554 = vld [vmem:[#allocation9 + $0x58] sm:$0xff]
      %v555 = vld [vmem:[#allocation9 + $0x60] sm:$0xff]
      %v556 = vld [vmem:[#allocation9 + $0x68] sm:$0xff]
      %v557 = vld [vmem:[#allocation9 + $0x70] sm:$0xff]
      %v558 = vld [vmem:[#allocation9 + $0x78] sm:$0xff]
      %v559 = vld [vmem:[%s5] sm:$0x1]
      %v561 = vlaneseq
      %v562 = vshrl.u32 %v561, 7
      %v563 = vsub.s32 0, %v562
      %v564 = vrot.slane %v559, %v563
      %566 = vmatprep.subr.mxu0 0.0
      %567 = vmatpush1.msra.mxu0 %v543
      %568 = vmatprep.subr.mxu0 0.0
      %569 = vmatpush1.msra.mxu0 %v544
      %570 = vmatprep.subr.mxu0 0.0
      %571 = vmatpush1.msra.mxu0 %v545
      %572 = vmatprep.subr.mxu0 0.0
      %573 = vmatpush1.msra.mxu0 %v546
      %574 = vmatprep.subr.mxu0 0.0
      %575 = vmatpush1.msra.mxu0 %v547
      %576 = vmatprep.subr.mxu0 0.0
      %577 = vmatpush1.msra.mxu0 %v548
      %578 = vmatprep.subr.mxu0 0.0
      %579 = vmatpush1.msra.mxu0 %v549
      %580 = vmatprep.subr.mxu0 0.0
      %581 = vmatpush1.msra.mxu0 %v550
      %582 = vmatprep.subr.mxu0 0.0
      %583 = vmatpush1.msra.mxu0 %v551
      %584 = vmatprep.subr.mxu0 0.0
      %585 = vmatpush1.msra.mxu0 %v552
      %586 = vmatprep.subr.mxu0 0.0
      %587 = vmatpush1.msra.mxu0 %v553
      %588 = vmatprep.subr.mxu0 0.0
      %589 = vmatpush1.msra.mxu0 %v554
      %590 = vmatprep.subr.mxu0 0.0
      %591 = vmatpush1.msra.mxu0 %v555
      %592 = vmatprep.subr.mxu0 0.0
      %593 = vmatpush1.msra.mxu0 %v556
      %594 = vmatprep.subr.mxu0 0.0
      %595 = vmatpush1.msra.mxu0 %v557
      %596 = vmatprep.subr.mxu0 0.0
      %597 = vmatpush1.msra.mxu0 %v558
      %598 = vmatprep.subr.mxu0 0.0
      %599 = vmatpush1.msra.mxu0 0.0
      %600 = vmatprep.subr.mxu0 0.0
      %601 = vmatpush1.msra.mxu0 0.0
      %602 = vmatprep.subr.mxu0 0.0
      %603 = vmatpush1.msra.mxu0 0.0
      %604 = vmatprep.subr.mxu0 0.0
      %605 = vmatpush1.msra.mxu0 0.0
      %606 = vmatprep.subr.mxu0 0.0
      %607 = vmatpush1.msra.mxu0 0.0
      %608 = vmatprep.subr.mxu0 0.0
      %609 = vmatpush1.msra.mxu0 0.0
      %610 = vmatprep.subr.mxu0 0.0
      %611 = vmatpush1.msra.mxu0 0.0
      %612 = vmatprep.subr.mxu0 0.0
      %613 = vmatpush1.msra.mxu0 0.0
      %614 = vmatprep.subr.mxu0 0.0
      %615 = vmatpush1.msra.mxu0 0.0
      %616 = vmatprep.subr.mxu0 0.0
      %617 = vmatpush1.msra.mxu0 0.0
      %618 = vmatprep.subr.mxu0 0.0
      %619 = vmatpush1.msra.mxu0 0.0
      %620 = vmatprep.subr.mxu0 0.0
      %621 = vmatpush1.msra.mxu0 0.0
      %622 = vmatprep.subr.mxu0 0.0
      %623 = vmatpush1.msra.mxu0 0.0
      %624 = vmatprep.subr.mxu0 0.0
      %625 = vmatpush1.msra.mxu0 0.0
      %626 = vmatprep.subr.mxu0 0.0
      %627 = vmatpush1.msra.mxu0 0.0
      %628 = vmatprep.subr.mxu0 0.0
      %629 = vmatpush1.msra.mxu0 0.0
      %630 = vmatprep.mubr.f32.mxu0 0.0
      %631 = vmatmul.mubr.f32.gmra.mrb[0].mxu0 %v527
      %v632 = vpop.f32.mrb[0].mxu0
      %v633 = vadd.f32 %v564, %v632
      %v634 = vpop.f32.mrb[0].mxu0
      %635 = vmatprep.mubr.f32.mxu0 0.0
      %636 = vmatmul.mubr.f32.gmra.mrb[0].mxu0 %v528
      %v637 = vpop.f32.mrb[0].mxu0
      %v638 = vadd.f32 %v564, %v637
      %v639 = vpop.f32.mrb[0].mxu0
      %640 = vmatprep.mubr.f32.mxu0 0.0
      %641 = vmatmul.mubr.f32.gmra.mrb[0].mxu0 %v529
      %v642 = vpop.f32.mrb[0].mxu0
      %v643 = vadd.f32 %v564, %v642
      %v644 = vpop.f32.mrb[0].mxu0
      %645 = vmatprep.mubr.f32.mxu0 0.0
      %646 = vmatmul.mubr.f32.gmra.mrb[0].mxu0 %v530
      %v647 = vpop.f32.mrb[0].mxu0
      %v648 = vadd.f32 %v564, %v647
      %v649 = vpop.f32.mrb[0].mxu0
      %650 = vmatprep.mubr.f32.mxu0 0.0
      %651 = vmatmul.mubr.f32.gmra.mrb[0].mxu0 %v531
      %v652 = vpop.f32.mrb[0].mxu0
      %v653 = vadd.f32 %v564, %v652
      %v654 = vpop.f32.mrb[0].mxu0
      %655 = vmatprep.mubr.f32.mxu0 0.0
      %656 = vmatmul.mubr.f32.gmra.mrb[0].mxu0 %v532
      %v657 = vpop.f32.mrb[0].mxu0
      %v658 = vadd.f32 %v564, %v657
      %v659 = vpop.f32.mrb[0].mxu0
      %660 = vmatprep.mubr.f32.mxu0 0.0
      %661 = vmatmul.mubr.f32.gmra.mrb[0].mxu0 %v533
      %v662 = vpop.f32.mrb[0].mxu0
      %v663 = vadd.f32 %v564, %v662
      %v664 = vpop.f32.mrb[0].mxu0
      %665 = vmatprep.mubr.f32.mxu0 0.0
      %666 = vmatmul.mubr.f32.gmra.mrb[0].mxu0 %v534
      %v667 = vpop.f32.mrb[0].mxu0
      %v668 = vadd.f32 %v564, %v667
      %v669 = vpop.f32.mrb[0].mxu0
      %670 = vmatprep.mubr.f32.mxu0 0.0
      %671 = vmatmul.mubr.f32.gmra.mrb[0].mxu0 %v535
      %v672 = vpop.f32.mrb[0].mxu0
      %v673 = vadd.f32 %v564, %v672
      %v674 = vpop.f32.mrb[0].mxu0
      %675 = vmatprep.mubr.f32.mxu0 0.0
      %676 = vmatmul.mubr.f32.gmra.mrb[0].mxu0 %v536
      %v677 = vpop.f32.mrb[0].mxu0
      %v678 = vadd.f32 %v564, %v677
      %v679 = vpop.f32.mrb[0].mxu0
      %680 = vmatprep.mubr.f32.mxu0 0.0
      %681 = vmatmul.mubr.f32.gmra.mrb[0].mxu0 %v537
      %v682 = vpop.f32.mrb[0].mxu0
      %v683 = vadd.f32 %v564, %v682
      %v684 = vpop.f32.mrb[0].mxu0
      %685 = vmatprep.mubr.f32.mxu0 0.0
      %686 = vmatmul.mubr.f32.gmra.mrb[0].mxu0 %v538
      %v687 = vpop.f32.mrb[0].mxu0
      %v688 = vadd.f32 %v564, %v687
      %v689 = vpop.f32.mrb[0].mxu0
      %690 = vmatprep.mubr.f32.mxu0 0.0
      %691 = vmatmul.mubr.f32.gmra.mrb[0].mxu0 %v539
      %v692 = vpop.f32.mrb[0].mxu0
      %v693 = vadd.f32 %v564, %v692
      %v694 = vpop.f32.mrb[0].mxu0
      %695 = vmatprep.mubr.f32.mxu0 0.0
      %696 = vmatmul.mubr.f32.gmra.mrb[0].mxu0 %v540
      %v697 = vpop.f32.mrb[0].mxu0
      %v698 = vadd.f32 %v564, %v697
      %v699 = vpop.f32.mrb[0].mxu0
      %700 = vmatprep.mubr.f32.mxu0 0.0
      %701 = vmatmul.mubr.f32.gmra.mrb[0].mxu0 %v541
      %v702 = vpop.f32.mrb[0].mxu0
      %v703 = vadd.f32 %v564, %v702
      %v704 = vpop.f32.mrb[0].mxu0
      %705 = vmatprep.mubr.f32.mxu0 0.0
      %706 = vmatmul.mubr.f32.gmra.mrb[0].mxu0 %v542
      %v707 = vpop.f32.mrb[0].mxu0
      %v708 = vadd.f32 %v564, %v707
      %v709 = vpop.f32.mrb[0].mxu0
      %710 = vdwg.mxu0
      %711 = vst [vmem:[#allocation11] sm:$0xff] %v633
      %712 = vst [vmem:[#allocation11 + $0x8] sm:$0xff] %v638
      %713 = vst [vmem:[#allocation11 + $0x10] sm:$0xff] %v643
      %714 = vst [vmem:[#allocation11 + $0x18] sm:$0xff] %v648
      %715 = vst [vmem:[#allocation11 + $0x20] sm:$0xff] %v653
      %716 = vst [vmem:[#allocation11 + $0x28] sm:$0xff] %v658
      %717 = vst [vmem:[#allocation11 + $0x30] sm:$0xff] %v663
      %718 = vst [vmem:[#allocation11 + $0x38] sm:$0xff] %v668
      %719 = vst [vmem:[#allocation11 + $0x40] sm:$0xff] %v673
      %720 = vst [vmem:[#allocation11 + $0x48] sm:$0xff] %v678
      %721 = vst [vmem:[#allocation11 + $0x50] sm:$0xff] %v683
      %722 = vst [vmem:[#allocation11 + $0x58] sm:$0xff] %v688
      %723 = vst [vmem:[#allocation11 + $0x60] sm:$0xff] %v693
      %724 = vst [vmem:[#allocation11 + $0x68] sm:$0xff] %v698
      %725 = vst [vmem:[#allocation11 + $0x70] sm:$0xff] %v703
      %726 = vst [vmem:[#allocation11 + $0x78] sm:$0xff] %v708
    $region49: #{tpu_custom_call.1} parent=1 // pred_fallthru
      _
    // Predicated region
    $region50: #{tpu_custom_call.1} parent=1 // pred_check
      _
    $region51: #{tpu_custom_call.1} parent=1 // pred_check_branch
      %728 = sbr.rel (0) target = $region53
    $region52: #{tpu_custom_call.1} parent=1 // pred_region
      %s730 = ssub.s32 2048, 2048
      %731 = vsyncadd [#allocation5], %s730
      %s732 = sshll.u32 [#allocation11], 4
      %s733 = int_to_ptr.vmem [resolvable:$true] %s732
      %738 = dma.vmem_to_hbm [thread:$0]  %s733, 2048, %s6, [#allocation5], 128, 128, 8
    $region53: #{tpu_custom_call.1} parent=1 // pred_fallthru
      _
    // Predicated region
    $region54: #{tpu_custom_call.1} parent=1 // pred_check
      _
    $region55: #{tpu_custom_call.1} parent=1 // pred_check_branch
      %740 = sbr.rel (0) target = $region57
    $region56: #{tpu_custom_call.1} parent=1 // pred_region
      %741 = dma.done [#allocation5], 2048
    $region57: #{tpu_custom_call.1} parent=1 // pred_fallthru
      _
    %742 = vsyncpa [#allocation4], 1
    %743 = vsyncpa [#allocation7], 1
    %744 = vsyncpa [#allocation10], 1
    %745 = vsyncpa [#allocation5], 1

</llo_original>
